<compile_context>
chip_gen: v5e
topology: v5e:2x2
jax: 0.10.0
libtpu: 0.0.40
codegen_flags: <defaults>
</compile_context>

<pallas_src>
import functools

import numpy as np
import jax
import jax.numpy as jnp
from jax import lax
from jax.experimental import pallas as pl
from jax.experimental.pallas import tpu as pltpu

_LANES = 128                      # TPU lane width
_MAX_GROUPS = 32                  # cap TT = groups*128 (keeps the unrolled loop short)
_TARGET_TILE_BYTES = 4 << 20      # ~4 MiB output tile -> ~8 MiB double-buffered


def _round_down(x: int, m: int) -> int:
    return (x // m) * m


def _encoder_tile_kernel(x_ref, w_ref, b_ref, o_ref, *, num_groups):
    """One output tile of `num_groups*128` frames x D features.

    x_ref: (1, num_groups, 128) lane-dense frames for this tile
    w_ref, b_ref: (1, D)
    o_ref: (num_groups*128, D)
    """
    w = w_ref[...]                                   # (1, D)  loaded once per tile
    b = b_ref[...]                                   # (1, D)
    x_tile = x_ref[0]                                # (G, 128)

    # Diagonal mask used to move frame values from lanes to sublanes:
    # col[s] = sum_l (x_row[l] * (l == s)).  VPU select + XLU lane-reduce only.
    sub = lax.broadcasted_iota(jnp.int32, (_LANES, _LANES), 0)
    lane = lax.broadcasted_iota(jnp.int32, (_LANES, _LANES), 1)
    eye = (sub == lane).astype(jnp.float32)          # hoisted out of the group loop

    for g in range(num_groups):                      # static unroll, <= _MAX_GROUPS
        row = x_tile[g:g + 1, :]                                  # (1, 128)
        xb = jnp.broadcast_to(row, (_LANES, _LANES))              # cheap sublane bcast
        col = jnp.sum(xb * eye, axis=1, keepdims=True)            # (128, 1)
        # Pure VPU broadcast FMA (no K=1 MXU round trip).
        o_ref[pl.ds(g * _LANES, _LANES), :] = (col * w + b).astype(o_ref.dtype)


def _encoder_small_kernel(x_ref, w_ref, b_ref, o_ref):
    """Whole (tiny) problem in a single block.  x_ref: (N,1), w/b: (1,D), o: (N,D)."""
    o_ref[...] = (x_ref[...] * w_ref[...] + b_ref[...]).astype(o_ref.dtype)


def encoder_forward(x, x_lens, weight, bias, *, out_dtype=jnp.float32):
    """Concrete EncoderInterface.forward.

    Args:
      x:      (B, T) or (B, T, 1)
      x_lens: (B,) int32
      weight: (1, D)
      bias:   (1, D)
      out_dtype: output dtype (float32 default; bfloat16 halves HBM writes)
    Returns:
      output:      (B, T, D)
      output_lens: (B,)   (== x_lens; no temporal subsampling)
    """
    if x.ndim == 2:
        x = x[:, :, None]
    B, T, F = x.shape
    assert F == 1, "EncoderInterface contract: feature dim is 1"
    D = weight.shape[1]
    N = B * T

    x32 = x.astype(jnp.float32).reshape(N)           # flatten (B, T) -> one row axis
    w32 = weight.astype(jnp.float32).reshape(1, D)
    b32 = bias.astype(jnp.float32).reshape(1, D)

    if N < _LANES:
        # Tiny problem: one whole-array block, no tiling / masking machinery.
        out_flat = pl.pallas_call(
            _encoder_small_kernel,
            out_shape=jax.ShapeDtypeStruct((N, D), out_dtype),
        )(x32.reshape(N, 1), w32, b32)
        return out_flat.reshape(B, T, D), x_lens

    # ---------------- tiled path ----------------------------------------------
    row_bytes = D * np.dtype(out_dtype).itemsize
    tt_bytes = max(_LANES, _round_down(_TARGET_TILE_BYTES // row_bytes, _LANES))
    TT = min(tt_bytes, _MAX_GROUPS * _LANES, _round_down(N, _LANES))  # TT <= N
    num_tiles = pl.cdiv(N, TT)
    G = TT // _LANES

    # Pad only x (4 bytes/frame) so every x block is in-bounds; the output stays
    # exactly (N, D): boundary-tile stores beyond N are masked by Pallas, and the
    # final reshape to (B, T, D) is free (no slice copy, no second HBM pass).
    n_pad = num_tiles * TT
    if n_pad != N:
        x32 = jnp.pad(x32, (0, n_pad - N))
    x3 = x32.reshape(num_tiles, G, _LANES)            # lane-dense frame blocks

    out_flat = pl.pallas_call(
        functools.partial(_encoder_tile_kernel, num_groups=G),
        out_shape=jax.ShapeDtypeStruct((N, D), out_dtype),
        grid_spec=pltpu.PrefetchScalarGridSpec(
            num_scalar_prefetch=0,
            grid=(num_tiles,),
            in_specs=[
                pl.BlockSpec((1, G, _LANES), lambda t: (t, 0, 0)),
                pl.BlockSpec((1, D), lambda t: (0, 0)),
                pl.BlockSpec((1, D), lambda t: (0, 0)),
            ],
            out_specs=pl.BlockSpec((TT, D), lambda t: (t, 0)),
        ),
        compiler_params=pltpu.CompilerParams(
            dimension_semantics=("parallel",),
            vmem_limit_bytes=32 * 1024 * 1024,
        ),
    )(x3, w32, b32)

    output = out_flat.reshape(B, T, D)
    return output, x_lens


if __name__ == "__main__":
    key = jax.random.PRNGKey(0)
    k1, k2, k3, kw, kb = jax.random.split(key, 5)

    D = 32  # output_dim
    weight = jax.random.normal(kw, (1, D), dtype=jnp.float32) * 0.1
    bias = jax.random.normal(kb, (1, D), dtype=jnp.float32) * 0.01

    fwd = jax.jit(encoder_forward)

    def check(x, lens):
        out, out_lens = fwd(x, lens, weight, bias)
        out = jax.block_until_ready(out)
        out_lens = jax.block_until_ready(out_lens)
        x3 = x if x.ndim == 3 else x[:, :, None]
        ref = x3.astype(jnp.float32) * weight + bias
        assert out.shape == ref.shape, (out.shape, ref.shape)
        assert jnp.allclose(out, ref, atol=1e-5), "mismatch vs. reference"
        assert jnp.array_equal(out_lens, lens)

    # Tiled path, B*T an exact multiple of the 128-frame groups.
    check(jax.random.normal(k1, (2, 64), dtype=jnp.float32),
          jnp.array([64, 59], dtype=jnp.int32))
    # Tiled path with a partial boundary tile (B*T = 150, masked writeback).
    check(jax.random.normal(k2, (2, 75, 1), dtype=jnp.float32),
          jnp.array([75, 40], dtype=jnp.int32))
    # Tiny-input single-block path (B*T < 128).
    check(jax.random.normal(k3, (2, 8), dtype=jnp.float32),
          jnp.array([8, 5], dtype=jnp.int32))

    print("KERNEL_OK")
</pallas_src>

<mosaic_0001>
module attributes {stable_mosaic.version = 11 : i64} {
  func.func @_encoder_tile_kernel(%arg0: i32, %arg1: memref<1x1x128xf32, #tpu.memory_space<vmem>>, %arg2: memref<1x32xf32, #tpu.memory_space<vmem>>, %arg3: memref<1x32xf32, #tpu.memory_space<vmem>>, %arg4: memref<128x32xf32, #tpu.memory_space<vmem>>) attributes {dimension_semantics = [#tpu.dimension_semantics<parallel>], iteration_bounds = array<i64: 1>, scalar_prefetch = 0 : i64, scratch_operands = 0 : i64, tpu.core_type = #tpu.core_type<tc>, window_params = [{transform_indices = @transform_0, window_bounds = array<i64: 1, 1, 128>}, {pipeline_mode = #tpu.pipeline_mode<synchronous>, transform_indices = @transform_1, window_bounds = array<i64: 1, 32>}, {pipeline_mode = #tpu.pipeline_mode<synchronous>, transform_indices = @transform_2, window_bounds = array<i64: 1, 32>}, {transform_indices = @transform_3, window_bounds = array<i64: 128, 32>}]} {
    %c0 = arith.constant 0 : index
    %c0_0 = arith.constant 0 : index
    %0 = vector.load %arg2[%c0, %c0_0] : memref<1x32xf32, #tpu.memory_space<vmem>>, vector<1x32xf32>
    %c0_1 = arith.constant 0 : index
    %c0_2 = arith.constant 0 : index
    %1 = vector.load %arg3[%c0_1, %c0_2] : memref<1x32xf32, #tpu.memory_space<vmem>>, vector<1x32xf32>
    %c0_3 = arith.constant 0 : index
    %c0_4 = arith.constant 0 : index
    %c0_5 = arith.constant 0 : index
    %2 = vector.load %arg1[%c0_3, %c0_4, %c0_5] : memref<1x1x128xf32, #tpu.memory_space<vmem>>, vector<1x1x128xf32>
    %3 = vector.shape_cast %2 : vector<1x1x128xf32> to vector<1x128xf32>
    %4 = tpu.iota {dimensions = array<i32: 0>} : vector<128x128xi32>
    %5 = tpu.iota {dimensions = array<i32: 1>} : vector<128x128xi32>
    %6 = arith.cmpi eq, %4, %5 : vector<128x128xi32>
    %7 = arith.extui %6 : vector<128x128xi1> to vector<128x128xi32>
    %8 = arith.sitofp %7 : vector<128x128xi32> to vector<128x128xf32>
    %9 = vector.shape_cast %3 : vector<1x128xf32> to vector<1x128xf32>
    %10 = vector.broadcast %9 : vector<1x128xf32> to vector<128x128xf32>
    %11 = arith.mulf %10, %8 : vector<128x128xf32>
    %cst = arith.constant dense<0.000000e+00> : vector<128xf32>
    %12 = vector.multi_reduction <add>, %11, %cst [1] : vector<128x128xf32> to vector<128xf32>
    %13 = vector.shape_cast %12 : vector<128xf32> to vector<128x1xf32>
    %14 = vector.broadcast %13 : vector<128x1xf32> to vector<128x32xf32>
    %15 = vector.broadcast %0 : vector<1x32xf32> to vector<128x32xf32>
    %16 = arith.mulf %14, %15 : vector<128x32xf32>
    %17 = vector.broadcast %1 : vector<1x32xf32> to vector<128x32xf32>
    %18 = arith.addf %16, %17 : vector<128x32xf32>
    %c0_6 = arith.constant 0 : index
    %c0_7 = arith.constant 0 : index
    %19 = vector.load %arg4[%c0_6, %c0_7] : memref<128x32xf32, #tpu.memory_space<vmem>>, vector<128x32xf32>
    tpu.vector_store %arg4[%c0_6, %c0_7], %18 {strides = array<i32>} : memref<128x32xf32, #tpu.memory_space<vmem>>, vector<128x32xf32>,
    return
  }
  func.func @transform_0(%arg0: i32) -> (i32, i32, i32) {
    %c0_i32 = arith.constant 0 : i32
    %c0_i32_0 = arith.constant 0 : i32
    %c0_i32_1 = arith.constant 0 : i32
    return %arg0, %c0_i32, %c0_i32_0 : i32, i32, i32
  }
  func.func @transform_1(%arg0: i32) -> (i32, i32) {
    %c0_i32 = arith.constant 0 : i32
    %c0_i32_0 = arith.constant 0 : i32
    %c0_i32_1 = arith.constant 0 : i32
    return %c0_i32, %c0_i32_0 : i32, i32
  }
  func.func @transform_2(%arg0: i32) -> (i32, i32) {
    %c0_i32 = arith.constant 0 : i32
    %c0_i32_0 = arith.constant 0 : i32
    %c0_i32_1 = arith.constant 0 : i32
    return %c0_i32, %c0_i32_0 : i32, i32
  }
  func.func @transform_3(%arg0: i32) -> (i32, i32) {
    %c0_i32 = arith.constant 0 : i32
    %c0_i32_0 = arith.constant 0 : i32
    return %arg0, %c0_i32 : i32, i32
  }
}

</mosaic_0001>

<llo_original>
// kernel: encoder_forward.1
$region0: #{encoder_forward.1}
  #allocation0 [shape = 'u32[]', space=smem, size = 0x4, offset = 0x4, fixed_abs, tag = 'smem constant byte address 0x4 - core index']
  #allocation1 [shape = 'u32[72,128]{1,0:T(1,128)}', space=vmem, size = 0x9000, scoped, tag = 'internal scratch']
  %s0 = inlined_call_operand.vmem [shape: f32[1,1,128], index: 0, kind: input, shape index: {}]
  %s1 = inlined_call_operand.vmem [shape: f32[1,32], index: 1, kind: input, shape index: {}]
  %s2 = inlined_call_operand.vmem [shape: f32[1,32], index: 2, kind: input, shape index: {}]
  %s3 = inlined_call_operand.vmem [shape: f32[128,32], index: 3, kind: output, shape index: {}]
  %s4 = sld [smem:[#allocation0]]
  $region22: #{encoder_forward.1} parent=0
    _
  %s6 = ssub.s32 1, %s4
  %s7 = scalar_select 0, %s6, %s4
  // Predicated region
  $region2: #{encoder_forward.1} parent=0 // pred_check
    _
  $region3: #{encoder_forward.1} parent=0 // pred_check_branch
    %9 = sbr.rel (0) target = $region5
  $region4: #{encoder_forward.1} parent=0 // pred_region
    _
  $region5: #{encoder_forward.1} parent=0 // pred_fallthru
    _
  // Predicated region
  $region6: #{encoder_forward.1} parent=0 // pred_check
    _
  $region7: #{encoder_forward.1} parent=0 // pred_check_branch
    %11 = sbr.rel (0) target = $region9
  $region8: #{encoder_forward.1} parent=0 // pred_region
    _
  $region9: #{encoder_forward.1} parent=0 // pred_fallthru
    _
  // Predicated region
  $region10: #{encoder_forward.1} parent=0 // pred_check
    _
  $region11: #{encoder_forward.1} parent=0 // pred_check_branch
    %13 = sbr.rel (0) target = $region13
  $region12: #{encoder_forward.1} parent=0 // pred_region
    _
  $region13: #{encoder_forward.1} parent=0 // pred_fallthru
    _
  %v14 = vld [vmem:[%s1] sm:$0x1]
  %v15 = vld [vmem:[%s2] sm:$0x1]
  %v16 = vld [vmem:[%s0] sm:$0x1]
  %v17 = vlaneseq
  %v18 = vshrl.u32 %v17, 7
  %v19 = vadd.s32 %v18, 8
  %v20 = vadd.s32 %v18, 16
  %v21 = vadd.s32 %v18, 24
  %v22 = vadd.s32 %v18, 32
  %v23 = vadd.s32 %v18, 40
  %v24 = vadd.s32 %v18, 48
  %v25 = vadd.s32 %v18, 56
  %v26 = vadd.s32 %v18, 64
  %v27 = vadd.s32 %v18, 72
  %v28 = vadd.s32 %v18, 80
  %v29 = vadd.s32 %v18, 88
  %v30 = vadd.s32 %v18, 96
  %v31 = vadd.s32 %v18, 104
  %v32 = vadd.s32 %v18, 112
  %v33 = vadd.s32 %v18, 120
  %v34 = vlaneseq
  %v35 = vand.u32 %v34, 127
  %vm36 = vcmp.eq.s32.totalorder %v18, %v35
  %vm37 = vcmp.eq.s32.totalorder %v19, %v35
  %vm38 = vcmp.eq.s32.totalorder %v20, %v35
  %vm39 = vcmp.eq.s32.totalorder %v21, %v35
  %vm40 = vcmp.eq.s32.totalorder %v22, %v35
  %vm41 = vcmp.eq.s32.totalorder %v23, %v35
  %vm42 = vcmp.eq.s32.totalorder %v24, %v35
  %vm43 = vcmp.eq.s32.totalorder %v25, %v35
  %vm44 = vcmp.eq.s32.totalorder %v26, %v35
  %vm45 = vcmp.eq.s32.totalorder %v27, %v35
  %vm46 = vcmp.eq.s32.totalorder %v28, %v35
  %vm47 = vcmp.eq.s32.totalorder %v29, %v35
  %vm48 = vcmp.eq.s32.totalorder %v30, %v35
  %vm49 = vcmp.eq.s32.totalorder %v31, %v35
  %vm50 = vcmp.eq.s32.totalorder %v32, %v35
  %vm51 = vcmp.eq.s32.totalorder %v33, %v35
  %v52 = vsel %vm36, 1, 0
  %v53 = vsel %vm37, 1, 0
  %v54 = vsel %vm38, 1, 0
  %v55 = vsel %vm39, 1, 0
  %v56 = vsel %vm40, 1, 0
  %v57 = vsel %vm41, 1, 0
  %v58 = vsel %vm42, 1, 0
  %v59 = vsel %vm43, 1, 0
  %v60 = vsel %vm44, 1, 0
  %v61 = vsel %vm45, 1, 0
  %v62 = vsel %vm46, 1, 0
  %v63 = vsel %vm47, 1, 0
  %v64 = vsel %vm48, 1, 0
  %v65 = vsel %vm49, 1, 0
  %v66 = vsel %vm50, 1, 0
  %v67 = vsel %vm51, 1, 0
  %v68 = vcvt.s32.f32 %v52
  %v69 = vcvt.s32.f32 %v53
  %v70 = vcvt.s32.f32 %v54
  %v71 = vcvt.s32.f32 %v55
  %v72 = vcvt.s32.f32 %v56
  %v73 = vcvt.s32.f32 %v57
  %v74 = vcvt.s32.f32 %v58
  %v75 = vcvt.s32.f32 %v59
  %v76 = vcvt.s32.f32 %v60
  %v77 = vcvt.s32.f32 %v61
  %v78 = vcvt.s32.f32 %v62
  %v79 = vcvt.s32.f32 %v63
  %v80 = vcvt.s32.f32 %v64
  %v81 = vcvt.s32.f32 %v65
  %v82 = vcvt.s32.f32 %v66
  %v83 = vcvt.s32.f32 %v67
  %v85 = vperm.slane %v16, 0
  %v87 = vmul.f32 %v85, %v68
  %v88 = vmul.f32 %v85, %v69
  %v89 = vmul.f32 %v85, %v70
  %v90 = vmul.f32 %v85, %v71
  %v91 = vmul.f32 %v85, %v72
  %v92 = vmul.f32 %v85, %v73
  %v93 = vmul.f32 %v85, %v74
  %v94 = vmul.f32 %v85, %v75
  %v95 = vmul.f32 %v85, %v76
  %v96 = vmul.f32 %v85, %v77
  %v97 = vmul.f32 %v85, %v78
  %v98 = vmul.f32 %v85, %v79
  %v99 = vmul.f32 %v85, %v80
  %v100 = vmul.f32 %v85, %v81
  %v101 = vmul.f32 %v85, %v82
  %v102 = vmul.f32 %v85, %v83
  %103 = vadd.xlane.f32.xlu0 %v87
  %v104 = vpop.xlane.xlu0 %103
  %105 = vadd.xlane.f32.xlu0 %v88
  %v106 = vpop.xlane.xlu0 %105
  %107 = vadd.xlane.f32.xlu0 %v89
  %v108 = vpop.xlane.xlu0 %107
  %109 = vadd.xlane.f32.xlu0 %v90
  %v110 = vpop.xlane.xlu0 %109
  %111 = vadd.xlane.f32.xlu0 %v91
  %v112 = vpop.xlane.xlu0 %111
  %113 = vadd.xlane.f32.xlu0 %v92
  %v114 = vpop.xlane.xlu0 %113
  %115 = vadd.xlane.f32.xlu0 %v93
  %v116 = vpop.xlane.xlu0 %115
  %117 = vadd.xlane.f32.xlu0 %v94
  %v118 = vpop.xlane.xlu0 %117
  %119 = vadd.xlane.f32.xlu0 %v95
  %v120 = vpop.xlane.xlu0 %119
  %121 = vadd.xlane.f32.xlu0 %v96
  %v122 = vpop.xlane.xlu0 %121
  %123 = vadd.xlane.f32.xlu0 %v97
  %v124 = vpop.xlane.xlu0 %123
  %125 = vadd.xlane.f32.xlu0 %v98
  %v126 = vpop.xlane.xlu0 %125
  %127 = vadd.xlane.f32.xlu0 %v99
  %v128 = vpop.xlane.xlu0 %127
  %129 = vadd.xlane.f32.xlu0 %v100
  %v130 = vpop.xlane.xlu0 %129
  %131 = vadd.xlane.f32.xlu0 %v101
  %v132 = vpop.xlane.xlu0 %131
  %133 = vadd.xlane.f32.xlu0 %v102
  %v134 = vpop.xlane.xlu0 %133
  %v136 = vperm.slane %v14, 0
  %v138 = vmul.f32 %v104, %v136
  %v139 = vmul.f32 %v106, %v136
  %v140 = vmul.f32 %v108, %v136
  %v141 = vmul.f32 %v110, %v136
  %v142 = vmul.f32 %v112, %v136
  %v143 = vmul.f32 %v114, %v136
  %v144 = vmul.f32 %v116, %v136
  %v145 = vmul.f32 %v118, %v136
  %v146 = vmul.f32 %v120, %v136
  %v147 = vmul.f32 %v122, %v136
  %v148 = vmul.f32 %v124, %v136
  %v149 = vmul.f32 %v126, %v136
  %v150 = vmul.f32 %v128, %v136
  %v151 = vmul.f32 %v130, %v136
  %v152 = vmul.f32 %v132, %v136
  %v153 = vmul.f32 %v134, %v136
  %v155 = vperm.slane %v15, 0
  %v157 = vadd.f32 %v138, %v155
  %v158 = vadd.f32 %v139, %v155
  %v159 = vadd.f32 %v140, %v155
  %v160 = vadd.f32 %v141, %v155
  %v161 = vadd.f32 %v142, %v155
  %v162 = vadd.f32 %v143, %v155
  %v163 = vadd.f32 %v144, %v155
  %v164 = vadd.f32 %v145, %v155
  %v165 = vadd.f32 %v146, %v155
  %v166 = vadd.f32 %v147, %v155
  %v167 = vadd.f32 %v148, %v155
  %v168 = vadd.f32 %v149, %v155
  %v169 = vadd.f32 %v150, %v155
  %v170 = vadd.f32 %v151, %v155
  %v171 = vadd.f32 %v152, %v155
  %v172 = vadd.f32 %v153, %v155
  %vm173 = vcmask 261120
  %174 = vst.msk [vmem:[%s3] sm:$0xff] %vm173, %v157
  %175 = vst.msk [vmem:[%s3 + $0x8] sm:$0xff] %vm173, %v158
  %176 = vst.msk [vmem:[%s3 + $0x10] sm:$0xff] %vm173, %v159
  %177 = vst.msk [vmem:[%s3 + $0x18] sm:$0xff] %vm173, %v160
  %178 = vst.msk [vmem:[%s3 + $0x20] sm:$0xff] %vm173, %v161
  %179 = vst.msk [vmem:[%s3 + $0x28] sm:$0xff] %vm173, %v162
  %180 = vst.msk [vmem:[%s3 + $0x30] sm:$0xff] %vm173, %v163
  %181 = vst.msk [vmem:[%s3 + $0x38] sm:$0xff] %vm173, %v164
  %182 = vst.msk [vmem:[%s3 + $0x40] sm:$0xff] %vm173, %v165
  %183 = vst.msk [vmem:[%s3 + $0x48] sm:$0xff] %vm173, %v166
  %184 = vst.msk [vmem:[%s3 + $0x50] sm:$0xff] %vm173, %v167
  %185 = vst.msk [vmem:[%s3 + $0x58] sm:$0xff] %vm173, %v168
  %186 = vst.msk [vmem:[%s3 + $0x60] sm:$0xff] %vm173, %v169
  %187 = vst.msk [vmem:[%s3 + $0x68] sm:$0xff] %vm173, %v170
  %188 = vst.msk [vmem:[%s3 + $0x70] sm:$0xff] %vm173, %v171
  %189 = vst.msk [vmem:[%s3 + $0x78] sm:$0xff] %vm173, %v172
  // Predicated region
  $region14: #{encoder_forward.1} parent=0 // pred_check
    _
  $region15: #{encoder_forward.1} parent=0 // pred_check_branch
    %191 = sbr.rel (0) target = $region17
  $region16: #{encoder_forward.1} parent=0 // pred_region
    _
  $region17: #{encoder_forward.1} parent=0 // pred_fallthru
    _
  // Predicated region
  $region18: #{encoder_forward.1} parent=0 // pred_check
    _
  $region19: #{encoder_forward.1} parent=0 // pred_check_branch
    %193 = sbr.rel (0) target = $region21
  $region20: #{encoder_forward.1} parent=0 // pred_region
    _
  $region21: #{encoder_forward.1} parent=0 // pred_fallthru
    _

</llo_original>
